<compile_context>
chip_gen: v7x
topology: tpu7x:2x2x1
jax: 0.10.0
libtpu: 0.0.40
codegen_flags: <defaults>
</compile_context>

<pallas_src>
import functools

import jax
import jax.numpy as jnp
from jax.experimental import pallas as pl
from jax.experimental.pallas import tpu as pltpu


def _round_up(x, m):
    return -(-x // m) * m


def _tuning_kernel(n_hidden, D, Tp, pk_ref, wpack_ref, bpack_ref,
                   wtail_ref, btail_ref, out_ref):
    # Activations live as (D, TB): batch on lanes, features on sublanes.
    h = pk_ref[0:D, :]                                        # (D, TB)
    for i in range(n_hidden):
        h = jnp.tanh(
            jnp.dot(wpack_ref[i], h, preferred_element_type=jnp.float32)
            + bpack_ref[i])                                   # (D,1) lane-bcast

    # Fused tail: rows [0:T) are lamb logits, rows [Tp:Tp+4) are coef.
    tail = (jnp.dot(wtail_ref[...], h, preferred_element_type=jnp.float32)
            + btail_ref[...])                                 # (Wc_pad, TB)

    d_hi = pk_ref[D:D + Tp, :]                                # diff[:, 1:]^T
    d_lo = pk_ref[D + Tp:D + 2 * Tp, :]                       # diff[:, :-1]^T
    oldq = pk_ref[D + 2 * Tp:D + 3 * Tp, :]                   # oldQ^T

    lamb = jnp.tanh(tail[0:Tp, :])
    # revisions = lamb * select(d)  (one select + one mul)
    q = oldq + lamb * jnp.where(lamb > 0, d_hi, d_lo)

    # Sublane-aligned plain stores; no iota/where on the store path.
    out_ref[0:Tp, :] = q
    out_ref[Tp:, :] = tail[Tp:, :]


def tuning_net_forward(X, diff, oldQ, weights, biases, tau_mat):
    """Pallas implementation of tuningNet.forward -> (newQ, coefficients)."""
    n_layers = len(weights)
    n_hidden = n_layers - 1
    assert n_hidden >= 1, "expects at least one hidden layer"

    f32 = jnp.float32
    B, in_dim = X.shape
    T = tau_mat.shape[1]

    # Common hidden-path width, sublane-aligned.  Zero padding keeps the math
    # exact (tanh(0)=0 propagates through zero weight rows/cols).
    D = _round_up(max([in_dim] + [w.shape[1] for w in weights[:-1]]), 8)
    Tp = _round_up(T, 8)            # newQ rows (sublane aligned)
    Cp = _round_up(4, 8)            # coef rows (sublane aligned)
    Wc_pad = Tp + Cp                # packed output rows

    # --- batch tiling: lane-dense, >=2 grid steps when batch is large -------
    B_lane = _round_up(B, 128)
    if B_lane >= 256:
        TB = 128
        t = 128
        while t <= min(2048, B_lane // 2):
            if B_lane % t == 0:
                TB = t
            t += 128
    else:
        TB = B_lane
    B_pad = B_lane
    grid = (B_pad // TB,)

    # --- wrapper-side packing (layout plumbing, not kernel work) ------------
    # Single varying slab: [X^T | diff_hi^T | diff_lo^T | oldQ^T], 8-aligned.
    R = D + 3 * Tp
    pk = jnp.zeros((R, B_pad), f32)
    pk = pk.at[:in_dim, :B].set(X.astype(f32).T)
    pk = pk.at[D:D + T, :B].set(diff[:, 1:].astype(f32).T)
    pk = pk.at[D + Tp:D + Tp + T, :B].set(diff[:, :-1].astype(f32).T)
    pk = pk.at[D + 2 * Tp:D + 2 * Tp + T, :B].set(oldQ.astype(f32).T)

    # Hidden layers, transposed so a layer is W_pack[i] @ h (+ b_pack[i]).
    W_pack = jnp.zeros((n_hidden, D, D), f32)
    b_pack = jnp.zeros((n_hidden, D, 1), f32)
    for i in range(n_hidden):
        w = weights[i].astype(f32)                     # (in_i, out_i)
        b = biases[i].astype(f32)                      # (out_i,)
        W_pack = W_pack.at[i, :w.shape[1], :w.shape[0]].set(w.T)
        b_pack = b_pack.at[i, :b.shape[0], 0].set(b)

    # Fuse last linear with the tau projection (transposed).
    w_last = weights[-1].astype(f32)                   # (d_prev, 4)
    b_last = biases[-1].astype(f32)                    # (4,)
    tau_f = tau_mat.astype(f32)                        # (4, T)
    d_prev = w_last.shape[0]
    W_tail = jnp.zeros((Wc_pad, D), f32)
    W_tail = W_tail.at[:T, :d_prev].set((w_last @ tau_f).T)   # lamb logits
    W_tail = W_tail.at[Tp:Tp + 4, :d_prev].set(w_last.T)      # coefficients
    b_tail = jnp.zeros((Wc_pad, 1), f32)
    b_tail = b_tail.at[:T, 0].set(b_last @ tau_f)
    b_tail = b_tail.at[Tp:Tp + 4, 0].set(b_last)

    cost = pl.CostEstimate(
        flops=2 * B_pad * (n_hidden * D * D + D * Wc_pad),
        transcendentals=B_pad * (n_hidden * D + Tp),
        bytes_accessed=4 * (R * B_pad + n_hidden * D * (D + 1)
                            + Wc_pad * (D + 1) + Wc_pad * B_pad),
    )

    kernel = functools.partial(_tuning_kernel, n_hidden, D, Tp)
    out = pl.pallas_call(
        kernel,
        out_shape=jax.ShapeDtypeStruct((Wc_pad, B_pad), f32),
        grid=grid,
        in_specs=[
            pl.BlockSpec((R, TB), lambda i: (0, i)),               # packed slab
            pl.BlockSpec((n_hidden, D, D), lambda i: (0, 0, 0)),   # W_pack
            pl.BlockSpec((n_hidden, D, 1), lambda i: (0, 0, 0)),   # b_pack
            pl.BlockSpec((Wc_pad, D), lambda i: (0, 0)),           # W_tail
            pl.BlockSpec((Wc_pad, 1), lambda i: (0, 0)),           # b_tail
        ],
        out_specs=pl.BlockSpec((Wc_pad, TB), lambda i: (0, i)),
        compiler_params=pltpu.CompilerParams(
            dimension_semantics=("parallel",)),
        cost_estimate=cost,
    )(pk, W_pack, b_pack, W_tail, b_tail)

    # Un-pack / un-transpose in the wrapper (free XLA slices).
    newQ = out[:T, :B].T
    coef = out[Tp:Tp + 4, :B].T
    return newQ, coef


def tuning_net_reference(X, diff, oldQ, weights, biases, tau_mat):
    """Pure-JAX reference mirroring the PyTorch forward."""
    h = X
    for i, (w, b) in enumerate(zip(weights, biases)):
        h = h @ w + b
        if i < len(weights) - 1:
            h = jnp.tanh(h)
    coef = h
    lamb = jnp.tanh(coef @ tau_mat)
    rev = jnp.where(lamb > 0, lamb * diff[:, 1:], lamb * diff[:, :-1])
    return oldQ + rev, coef


if __name__ == "__main__":
    # Small shapes consistent with the module:
    #   in_dim=32, hiddens=(32, 16), tau has T=8 entries, batch B=8.
    B, in_dim = 8, 32
    hiddens = (32, 16)
    T = 8

    dims = [in_dim] + list(hiddens) + [4]

    key = jax.random.PRNGKey(0)
    keys = jax.random.split(key, 2 * (len(dims) - 1) + 3)

    # Deterministic synthetic parameters (PyTorch-Linear-like uniform init).
    weights, biases = [], []
    ki = 0
    for i in range(1, len(dims)):
        fan_in = dims[i - 1]
        bound = 1.0 / jnp.sqrt(fan_in)
        w = jax.random.uniform(keys[ki], (dims[i - 1], dims[i]),
                               minval=-bound, maxval=bound, dtype=jnp.float32)
        b = jax.random.uniform(keys[ki + 1], (dims[i],),
                               minval=-bound, maxval=bound, dtype=jnp.float32)
        weights.append(w)
        biases.append(b)
        ki += 2

    # tau: list of T floats -> (1, T); stack [tau^0, tau, tau^2, tau^3] -> (4, T)
    tau = jnp.linspace(0.1, 0.8, T, dtype=jnp.float32).reshape(1, -1)
    tau_mat = jnp.concatenate([tau ** 0, tau, tau ** 2, tau ** 3], axis=0)

    # Inputs: X (B, in_dim), diff (B, T+1), oldQ (B, T)
    X = jax.random.normal(keys[ki], (B, in_dim), dtype=jnp.float32)
    diff = jax.random.normal(keys[ki + 1], (B, T + 1), dtype=jnp.float32)
    oldQ = jax.random.normal(keys[ki + 2], (B, T), dtype=jnp.float32)

    newQ, coef = tuning_net_forward(X, diff, oldQ, weights, biases, tau_mat)
    jax.block_until_ready((newQ, coef))

    newQ_ref, coef_ref = tuning_net_reference(X, diff, oldQ, weights, biases,
                                              tau_mat)
    assert newQ.shape == (B, T) and coef.shape == (B, 4)
    assert jnp.allclose(newQ, newQ_ref, atol=2e-5, rtol=2e-5), \
        float(jnp.max(jnp.abs(newQ - newQ_ref)))
    assert jnp.allclose(coef, coef_ref, atol=2e-5, rtol=2e-5), \
        float(jnp.max(jnp.abs(coef - coef_ref)))

    print("KERNEL_OK")
</pallas_src>

<mosaic_0001>
module attributes {stable_mosaic.version = 11 : i64} {
  func.func @_tuning_kernel(%arg0: i32, %arg1: memref<56x128xf32, #tpu.memory_space<vmem>>, %arg2: memref<2x32x32xf32, #tpu.memory_space<vmem>>, %arg3: memref<2x32x1xf32, #tpu.memory_space<vmem>>, %arg4: memref<16x32xf32, #tpu.memory_space<vmem>>, %arg5: memref<16x1xf32, #tpu.memory_space<vmem>>, %arg6: memref<16x128xf32, #tpu.memory_space<vmem>>) attributes {dimension_semantics = [#tpu.dimension_semantics<parallel>], iteration_bounds = array<i64: 1>, scalar_prefetch = 0 : i64, scratch_operands = 0 : i64, tpu.core_type = #tpu.core_type<tc>, window_params = [{transform_indices = @transform_0, window_bounds = array<i64: 56, 128>}, {pipeline_mode = #tpu.pipeline_mode<synchronous>, transform_indices = @transform_1, window_bounds = array<i64: 2, 32, 32>}, {pipeline_mode = #tpu.pipeline_mode<synchronous>, transform_indices = @transform_2, window_bounds = array<i64: 2, 32, 1>}, {pipeline_mode = #tpu.pipeline_mode<synchronous>, transform_indices = @transform_3, window_bounds = array<i64: 16, 32>}, {pipeline_mode = #tpu.pipeline_mode<synchronous>, transform_indices = @transform_4, window_bounds = array<i64: 16, 1>}, {transform_indices = @transform_5, window_bounds = array<i64: 16, 128>}]} {
    %c0 = arith.constant 0 : index
    %c0_0 = arith.constant 0 : index
    %0 = vector.load %arg1[%c0, %c0_0] : memref<56x128xf32, #tpu.memory_space<vmem>>, vector<32x128xf32>
    %c0_1 = arith.constant 0 : index
    %c0_2 = arith.constant 0 : index
    %c0_3 = arith.constant 0 : index
    %1 = vector.load %arg2[%c0_1, %c0_2, %c0_3] : memref<2x32x32xf32, #tpu.memory_space<vmem>>, vector<1x32x32xf32>
    %2 = vector.shape_cast %1 : vector<1x32x32xf32> to vector<32x32xf32>
    %cst = arith.constant dense<0.000000e+00> : vector<32x128xf32>
    %3 = tpu.matmul %2, %0, %cst {dimension_numbers = #tpu.dot_dimension_numbers<[1], [0], [0], [1], [0, 0, 1, 1], [], []>} : vector<32x32xf32>, vector<32x128xf32>, vector<32x128xf32> -> vector<32x128xf32>
    %c0_4 = arith.constant 0 : index
    %c0_5 = arith.constant 0 : index
    %c0_6 = arith.constant 0 : index
    %4 = vector.load %arg3[%c0_4, %c0_5, %c0_6] : memref<2x32x1xf32, #tpu.memory_space<vmem>>, vector<1x32x1xf32>
    %5 = vector.shape_cast %4 : vector<1x32x1xf32> to vector<32x1xf32>
    %6 = vector.broadcast %5 : vector<32x1xf32> to vector<32x128xf32>
    %7 = arith.addf %3, %6 : vector<32x128xf32>
    %8 = math.tanh %7 : vector<32x128xf32>
    %c1 = arith.constant 1 : index
    %c0_7 = arith.constant 0 : index
    %c0_8 = arith.constant 0 : index
    %9 = vector.load %arg2[%c1, %c0_7, %c0_8] : memref<2x32x32xf32, #tpu.memory_space<vmem>>, vector<1x32x32xf32>
    %10 = vector.shape_cast %9 : vector<1x32x32xf32> to vector<32x32xf32>
    %cst_9 = arith.constant dense<0.000000e+00> : vector<32x128xf32>
    %11 = tpu.matmul %10, %8, %cst_9 {dimension_numbers = #tpu.dot_dimension_numbers<[1], [0], [0], [1], [0, 0, 1, 1], [], []>} : vector<32x32xf32>, vector<32x128xf32>, vector<32x128xf32> -> vector<32x128xf32>
    %c1_10 = arith.constant 1 : index
    %c0_11 = arith.constant 0 : index
    %c0_12 = arith.constant 0 : index
    %12 = vector.load %arg3[%c1_10, %c0_11, %c0_12] : memref<2x32x1xf32, #tpu.memory_space<vmem>>, vector<1x32x1xf32>
    %13 = vector.shape_cast %12 : vector<1x32x1xf32> to vector<32x1xf32>
    %14 = vector.broadcast %13 : vector<32x1xf32> to vector<32x128xf32>
    %15 = arith.addf %11, %14 : vector<32x128xf32>
    %16 = math.tanh %15 : vector<32x128xf32>
    %c0_13 = arith.constant 0 : index
    %c0_14 = arith.constant 0 : index
    %17 = vector.load %arg4[%c0_13, %c0_14] : memref<16x32xf32, #tpu.memory_space<vmem>>, vector<16x32xf32>
    %cst_15 = arith.constant dense<0.000000e+00> : vector<16x128xf32>
    %18 = tpu.matmul %17, %16, %cst_15 {dimension_numbers = #tpu.dot_dimension_numbers<[1], [0], [0], [1], [0, 0, 1, 1], [], []>} : vector<16x32xf32>, vector<32x128xf32>, vector<16x128xf32> -> vector<16x128xf32>
    %c0_16 = arith.constant 0 : index
    %c0_17 = arith.constant 0 : index
    %19 = vector.load %arg5[%c0_16, %c0_17] : memref<16x1xf32, #tpu.memory_space<vmem>>, vector<16x1xf32>
    %20 = vector.broadcast %19 : vector<16x1xf32> to vector<16x128xf32>
    %21 = arith.addf %18, %20 : vector<16x128xf32>
    %c32 = arith.constant 32 : index
    %c0_18 = arith.constant 0 : index
    %22 = vector.load %arg1[%c32, %c0_18] : memref<56x128xf32, #tpu.memory_space<vmem>>, vector<8x128xf32>
    %c40 = arith.constant 40 : index
    %c0_19 = arith.constant 0 : index
    %23 = vector.load %arg1[%c40, %c0_19] : memref<56x128xf32, #tpu.memory_space<vmem>>, vector<8x128xf32>
    %c48 = arith.constant 48 : index
    %c0_20 = arith.constant 0 : index
    %24 = vector.load %arg1[%c48, %c0_20] : memref<56x128xf32, #tpu.memory_space<vmem>>, vector<8x128xf32>
    %25 = vector.extract_strided_slice %21 {offsets = [0, 0], sizes = [8, 128], strides = [1, 1]} : vector<16x128xf32> to vector<8x128xf32>
    %26 = math.tanh %25 : vector<8x128xf32>
    %cst_21 = arith.constant 0.000000e+00 : f32
    %27 = vector.broadcast %cst_21 : f32 to vector<8x128xf32>
    %28 = arith.cmpf ogt, %26, %27 : vector<8x128xf32>
    %29 = arith.select %28, %22, %23 : vector<8x128xi1>, vector<8x128xf32>
    %30 = arith.mulf %26, %29 : vector<8x128xf32>
    %31 = arith.addf %24, %30 : vector<8x128xf32>
    %c0_22 = arith.constant 0 : index
    %c0_23 = arith.constant 0 : index
    %32 = vector.load %arg6[%c0_22, %c0_23] : memref<16x128xf32, #tpu.memory_space<vmem>>, vector<8x128xf32>
    tpu.vector_store %arg6[%c0_22, %c0_23], %31 {strides = array<i32>} : memref<16x128xf32, #tpu.memory_space<vmem>>, vector<8x128xf32>,
    %33 = vector.extract_strided_slice %21 {offsets = [8, 0], sizes = [8, 128], strides = [1, 1]} : vector<16x128xf32> to vector<8x128xf32>
    %c8 = arith.constant 8 : index
    %c0_24 = arith.constant 0 : index
    %34 = vector.load %arg6[%c8, %c0_24] : memref<16x128xf32, #tpu.memory_space<vmem>>, vector<8x128xf32>
    tpu.vector_store %arg6[%c8, %c0_24], %33 {strides = array<i32>} : memref<16x128xf32, #tpu.memory_space<vmem>>, vector<8x128xf32>,
    return
  }
  func.func @transform_0(%arg0: i32) -> (i32, i32) {
    %c0_i32 = arith.constant 0 : i32
    %c0_i32_0 = arith.constant 0 : i32
    return %c0_i32, %arg0 : i32, i32
  }
  func.func @transform_1(%arg0: i32) -> (i32, i32, i32) {
    %c0_i32 = arith.constant 0 : i32
    %c0_i32_0 = arith.constant 0 : i32
    %c0_i32_1 = arith.constant 0 : i32
    %c0_i32_2 = arith.constant 0 : i32
    return %c0_i32, %c0_i32_0, %c0_i32_1 : i32, i32, i32
  }
  func.func @transform_2(%arg0: i32) -> (i32, i32, i32) {
    %c0_i32 = arith.constant 0 : i32
    %c0_i32_0 = arith.constant 0 : i32
    %c0_i32_1 = arith.constant 0 : i32
    %c0_i32_2 = arith.constant 0 : i32
    return %c0_i32, %c0_i32_0, %c0_i32_1 : i32, i32, i32
  }
  func.func @transform_3(%arg0: i32) -> (i32, i32) {
    %c0_i32 = arith.constant 0 : i32
    %c0_i32_0 = arith.constant 0 : i32
    %c0_i32_1 = arith.constant 0 : i32
    return %c0_i32, %c0_i32_0 : i32, i32
  }
  func.func @transform_4(%arg0: i32) -> (i32, i32) {
    %c0_i32 = arith.constant 0 : i32
    %c0_i32_0 = arith.constant 0 : i32
    %c0_i32_1 = arith.constant 0 : i32
    return %c0_i32, %c0_i32_0 : i32, i32
  }
  func.func @transform_5(%arg0: i32) -> (i32, i32) {
    %c0_i32 = arith.constant 0 : i32
    %c0_i32_0 = arith.constant 0 : i32
    return %c0_i32, %arg0 : i32, i32
  }
}

</mosaic_0001>

<llo_original>
// kernel: tpu_custom_call.1
$region0: #{tpu_custom_call.1}
  #allocation0 [shape = 'u32[]', space=smem, size = 0x4, offset = 0x4, fixed_abs, tag = 'smem constant byte address 0x4 - core index']
  #allocation1 [shape = 'u32[144,128]{1,0:T(1,128)}', space=vmem, size = 0x12000, scoped, tag = 'internal scratch']
  %s0 = inlined_call_operand.hbm [shape: f32[56,128], index: 0, kind: input, shape index: {}]
  %s1 = inlined_call_operand.vmem [shape: f32[2,32,32], index: 1, kind: input, shape index: {}]
  %s2 = inlined_call_operand.vmem [shape: f32[2,32,1], index: 2, kind: input, shape index: {}]
  %s3 = inlined_call_operand.vmem [shape: f32[16,32], index: 3, kind: input, shape index: {}]
  %s4 = inlined_call_operand.vmem [shape: f32[16,1], index: 4, kind: input, shape index: {}]
  %s5 = inlined_call_operand.hbm [shape: f32[16,128], index: 5, kind: output, shape index: {}]
  %s6 = sld [smem:[#allocation0]]
  $region34: #{tpu_custom_call.1} parent=0
    _
  %s8 = ssub.s32 1, %s6
  %s9 = scalar_select 0, %s8, %s6
  $region1: #{tpu_custom_call.1} parent=0
    #allocation2 [shape = 'u8[28672]{0}', space=vmem, size = 0x7000, scoped, tag = 'input window, operand 0, single buffered']
    #allocation3 [shape = 's32[1]{0}', space=sflag, size = 0x4, scoped, tag = 'scoped memory for tpu_custom_call.1']
    #allocation4 [shape = 's32[1]{0}', space=sflag, size = 0x4, scoped, tag = 'scoped memory for tpu_custom_call.1']
    #allocation5 [shape = 'u8[8192]{0}', space=vmem, size = 0x2000, scoped, tag = 'output window, operand 0, single buffered']
    %10 = vsyncpa [#allocation3], 0
    %11 = vsyncpa [#allocation4], 0
    // Predicated region
    $region2: #{tpu_custom_call.1} parent=1 // pred_check
      _
    $region3: #{tpu_custom_call.1} parent=1 // pred_check_branch
      %13 = sbr.rel (0) target = $region5
    $region4: #{tpu_custom_call.1} parent=1 // pred_region
      %s15 = ssub.s32 896, 896
      %16 = vsyncadd [#allocation3], %s15
      %s17 = sshll.u32 [#allocation2], 4
      %s18 = int_to_ptr.vmem [resolvable:$true] %s17
      %23 = dma.hbm_to_vmem [thread:$0]  %s0, 896, %s18, [#allocation3], 128, 128, 8
    $region5: #{tpu_custom_call.1} parent=1 // pred_fallthru
      _
    // Predicated region
    $region6: #{tpu_custom_call.1} parent=1 // pred_check
      _
    $region7: #{tpu_custom_call.1} parent=1 // pred_check_branch
      %25 = sbr.rel (0) target = $region9
    $region8: #{tpu_custom_call.1} parent=1 // pred_region
      _
    $region9: #{tpu_custom_call.1} parent=1 // pred_fallthru
      _
    // Predicated region
    $region10: #{tpu_custom_call.1} parent=1 // pred_check
      _
    $region11: #{tpu_custom_call.1} parent=1 // pred_check_branch
      %27 = sbr.rel (0) target = $region13
    $region12: #{tpu_custom_call.1} parent=1 // pred_region
      _
    $region13: #{tpu_custom_call.1} parent=1 // pred_fallthru
      _
    // Predicated region
    $region14: #{tpu_custom_call.1} parent=1 // pred_check
      _
    $region15: #{tpu_custom_call.1} parent=1 // pred_check_branch
      %29 = sbr.rel (0) target = $region17
    $region16: #{tpu_custom_call.1} parent=1 // pred_region
      _
    $region17: #{tpu_custom_call.1} parent=1 // pred_fallthru
      _
    // Predicated region
    $region18: #{tpu_custom_call.1} parent=1 // pred_check
      _
    $region19: #{tpu_custom_call.1} parent=1 // pred_check_branch
      %31 = sbr.rel (0) target = $region21
    $region20: #{tpu_custom_call.1} parent=1 // pred_region
      _
    $region21: #{tpu_custom_call.1} parent=1 // pred_fallthru
      _
    // Predicated region
    $region22: #{tpu_custom_call.1} parent=1 // pred_check
      _
    $region23: #{tpu_custom_call.1} parent=1 // pred_check_branch
      %33 = sbr.rel (0) target = $region25
    $region24: #{tpu_custom_call.1} parent=1 // pred_region
      %34 = dma.done [#allocation3], 896
    $region25: #{tpu_custom_call.1} parent=1 // pred_fallthru
      _
    %v35 = vld [vmem:[#allocation2] sm:$0xff]
    %v36 = vld [vmem:[#allocation2 + $0x8] sm:$0xff]
    %v37 = vld [vmem:[#allocation2 + $0x10] sm:$0xff]
    %v38 = vld [vmem:[#allocation2 + $0x18] sm:$0xff]
    %v39 = vld [vmem:[%s1] sm:$0xff]
    %v40 = vld [vmem:[%s1 + $0x8] sm:$0xff]
    %v41 = vld [vmem:[%s1 + $0x10] sm:$0xff]
    %v42 = vld [vmem:[%s1 + $0x18] sm:$0xff]
    %v43 = vld [vmem:[%s2] sm:$0xff]
    %v44 = vld [vmem:[%s2 + $0x8] sm:$0xff]
    %v45 = vld [vmem:[%s2 + $0x10] sm:$0xff]
    %v46 = vld [vmem:[%s2 + $0x18] sm:$0xff]
    %48 = vset.pattern.permute.xlu0 0
    %49 = vperm.xlu0 %48, %v43
    %v50 = vpop.permute.xlu0 %49
    %53 = vset.pattern.permute.xlu0 0
    %54 = vperm.xlu0 %53, %v44
    %v55 = vpop.permute.xlu0 %54
    %58 = vset.pattern.permute.xlu0 0
    %59 = vperm.xlu0 %58, %v45
    %v60 = vpop.permute.xlu0 %59
    %63 = vset.pattern.permute.xlu0 0
    %64 = vperm.xlu0 %63, %v46
    %v65 = vpop.permute.xlu0 %64
    %vm67 = vcmask 261120
    %v69 = vsel %vm67, %v39, 0
    %v72 = vsel %vm67, %v40, 0
    %v75 = vsel %vm67, %v41, 0
    %v78 = vsel %vm67, %v42, 0
    %80 = vmatprep.subr.mxu0 0.0
    %81 = vmatpush1.msra.mxu0 %v35
    %82 = vmatprep.subr.mxu0 0.0
    %83 = vmatpush1.msra.mxu0 %v36
    %84 = vmatprep.subr.mxu0 0.0
    %85 = vmatpush1.msra.mxu0 %v37
    %86 = vmatprep.subr.mxu0 0.0
    %87 = vmatpush1.msra.mxu0 %v38
    %88 = vmatprep.subr.mxu0 0.0
    %89 = vmatpush1.msra.mxu0 0.0
    %90 = vmatprep.subr.mxu0 0.0
    %91 = vmatpush1.msra.mxu0 0.0
    %92 = vmatprep.subr.mxu0 0.0
    %93 = vmatpush1.msra.mxu0 0.0
    %94 = vmatprep.subr.mxu0 0.0
    %95 = vmatpush1.msra.mxu0 0.0
    %96 = vmatprep.subr.mxu0 0.0
    %97 = vmatpush1.msra.mxu0 0.0
    %98 = vmatprep.subr.mxu0 0.0
    %99 = vmatpush1.msra.mxu0 0.0
    %100 = vmatprep.subr.mxu0 0.0
    %101 = vmatpush1.msra.mxu0 0.0
    %102 = vmatprep.subr.mxu0 0.0
    %103 = vmatpush1.msra.mxu0 0.0
    %104 = vmatprep.subr.mxu0 0.0
    %105 = vmatpush1.msra.mxu0 0.0
    %106 = vmatprep.subr.mxu0 0.0
    %107 = vmatpush1.msra.mxu0 0.0
    %108 = vmatprep.subr.mxu0 0.0
    %109 = vmatpush1.msra.mxu0 0.0
    %110 = vmatprep.subr.mxu0 0.0
    %111 = vmatpush1.msra.mxu0 0.0
    %112 = vmatprep.subr.mxu0 0.0
    %113 = vmatpush1.msra.mxu0 0.0
    %114 = vmatprep.subr.mxu0 0.0
    %115 = vmatpush1.msra.mxu0 0.0
    %116 = vmatprep.subr.mxu0 0.0
    %117 = vmatpush1.msra.mxu0 0.0
    %118 = vmatprep.subr.mxu0 0.0
    %119 = vmatpush1.msra.mxu0 0.0
    %120 = vmatprep.subr.mxu0 0.0
    %121 = vmatpush1.msra.mxu0 0.0
    %122 = vmatprep.subr.mxu0 0.0
    %123 = vmatpush1.msra.mxu0 0.0
    %124 = vmatprep.subr.mxu0 0.0
    %125 = vmatpush1.msra.mxu0 0.0
    %126 = vmatprep.subr.mxu0 0.0
    %127 = vmatpush1.msra.mxu0 0.0
    %128 = vmatprep.subr.mxu0 0.0
    %129 = vmatpush1.msra.mxu0 0.0
    %130 = vmatprep.subr.mxu0 0.0
    %131 = vmatpush1.msra.mxu0 0.0
    %132 = vmatprep.subr.mxu0 0.0
    %133 = vmatpush1.msra.mxu0 0.0
    %134 = vmatprep.subr.mxu0 0.0
    %135 = vmatpush1.msra.mxu0 0.0
    %136 = vmatprep.subr.mxu0 0.0
    %137 = vmatpush1.msra.mxu0 0.0
    %138 = vmatprep.subr.mxu0 0.0
    %139 = vmatpush1.msra.mxu0 0.0
    %140 = vmatprep.subr.mxu0 0.0
    %141 = vmatpush1.msra.mxu0 0.0
    %142 = vmatprep.subr.mxu0 0.0
    %143 = vmatpush1.msra.mxu0 0.0
    %144 = vmatprep.mubr.f32.mxu0 0.0
    %145 = vmatmul.mubr.f32.gmra.mrb[0].mxu0 %v69
    %v146 = vpop.f32.mrb[0].mxu0
    %v147 = vadd.f32 %v50, %v146
    %v148 = vpop.f32.mrb[0].mxu0
    %149 = vmatprep.mubr.f32.mxu0 0.0
    %150 = vmatmul.mubr.f32.gmra.mrb[0].mxu0 %v72
    %v151 = vpop.f32.mrb[0].mxu0
    %v152 = vadd.f32 %v55, %v151
    %v153 = vpop.f32.mrb[0].mxu0
    %154 = vmatprep.mubr.f32.mxu0 0.0
    %155 = vmatmul.mubr.f32.gmra.mrb[0].mxu0 %v75
    %v156 = vpop.f32.mrb[0].mxu0
    %v157 = vadd.f32 %v60, %v156
    %v158 = vpop.f32.mrb[0].mxu0
    %159 = vmatprep.mubr.f32.mxu0 0.0
    %160 = vmatmul.mubr.f32.gmra.mrb[0].mxu0 %v78
    %v161 = vpop.f32.mrb[0].mxu0
    %v162 = vadd.f32 %v65, %v161
    %v163 = vpop.f32.mrb[0].mxu0
    %164 = vdwg.mxu0
    %v165 = vtanh.pop %v147
    %v166 = vtanh.pop %v152
    %v167 = vtanh.pop %v157
    %v168 = vtanh.pop %v162
    %s169 = scalar_lea.vmem %s1, 32
    %v170 = vld [vmem:[%s169] sm:$0xff]
    %v171 = vld [vmem:[%s169 + $0x8] sm:$0xff]
    %v172 = vld [vmem:[%s169 + $0x10] sm:$0xff]
    %v173 = vld [vmem:[%s169 + $0x18] sm:$0xff]
    %s174 = scalar_lea.vmem %s2, 32
    %v175 = vld [vmem:[%s174] sm:$0xff]
    %v176 = vld [vmem:[%s174 + $0x8] sm:$0xff]
    %v177 = vld [vmem:[%s174 + $0x10] sm:$0xff]
    %v178 = vld [vmem:[%s174 + $0x18] sm:$0xff]
    %180 = vset.pattern.permute.xlu0 0
    %181 = vperm.xlu0 %180, %v175
    %v182 = vpop.permute.xlu0 %181
    %185 = vset.pattern.permute.xlu0 0
    %186 = vperm.xlu0 %185, %v176
    %v187 = vpop.permute.xlu0 %186
    %190 = vset.pattern.permute.xlu0 0
    %191 = vperm.xlu0 %190, %v177
    %v192 = vpop.permute.xlu0 %191
    %195 = vset.pattern.permute.xlu0 0
    %196 = vperm.xlu0 %195, %v178
    %v197 = vpop.permute.xlu0 %196
    %v200 = vsel %vm67, %v170, 0
    %v203 = vsel %vm67, %v171, 0
    %v206 = vsel %vm67, %v172, 0
    %v209 = vsel %vm67, %v173, 0
    %211 = vmatprep.subr.mxu0 0.0
    %212 = vmatpush1.msra.mxu0 %v165
    %213 = vmatprep.subr.mxu0 0.0
    %214 = vmatpush1.msra.mxu0 %v166
    %215 = vmatprep.subr.mxu0 0.0
    %216 = vmatpush1.msra.mxu0 %v167
    %217 = vmatprep.subr.mxu0 0.0
    %218 = vmatpush1.msra.mxu0 %v168
    %219 = vmatprep.subr.mxu0 0.0
    %220 = vmatpush1.msra.mxu0 0.0
    %221 = vmatprep.subr.mxu0 0.0
    %222 = vmatpush1.msra.mxu0 0.0
    %223 = vmatprep.subr.mxu0 0.0
    %224 = vmatpush1.msra.mxu0 0.0
    %225 = vmatprep.subr.mxu0 0.0
    %226 = vmatpush1.msra.mxu0 0.0
    %227 = vmatprep.subr.mxu0 0.0
    %228 = vmatpush1.msra.mxu0 0.0
    %229 = vmatprep.subr.mxu0 0.0
    %230 = vmatpush1.msra.mxu0 0.0
    %231 = vmatprep.subr.mxu0 0.0
    %232 = vmatpush1.msra.mxu0 0.0
    %233 = vmatprep.subr.mxu0 0.0
    %234 = vmatpush1.msra.mxu0 0.0
    %235 = vmatprep.subr.mxu0 0.0
    %236 = vmatpush1.msra.mxu0 0.0
    %237 = vmatprep.subr.mxu0 0.0
    %238 = vmatpush1.msra.mxu0 0.0
    %239 = vmatprep.subr.mxu0 0.0
    %240 = vmatpush1.msra.mxu0 0.0
    %241 = vmatprep.subr.mxu0 0.0
    %242 = vmatpush1.msra.mxu0 0.0
    %243 = vmatprep.subr.mxu0 0.0
    %244 = vmatpush1.msra.mxu0 0.0
    %245 = vmatprep.subr.mxu0 0.0
    %246 = vmatpush1.msra.mxu0 0.0
    %247 = vmatprep.subr.mxu0 0.0
    %248 = vmatpush1.msra.mxu0 0.0
    %249 = vmatprep.subr.mxu0 0.0
    %250 = vmatpush1.msra.mxu0 0.0
    %251 = vmatprep.subr.mxu0 0.0
    %252 = vmatpush1.msra.mxu0 0.0
    %253 = vmatprep.subr.mxu0 0.0
    %254 = vmatpush1.msra.mxu0 0.0
    %255 = vmatprep.subr.mxu0 0.0
    %256 = vmatpush1.msra.mxu0 0.0
    %257 = vmatprep.subr.mxu0 0.0
    %258 = vmatpush1.msra.mxu0 0.0
    %259 = vmatprep.subr.mxu0 0.0
    %260 = vmatpush1.msra.mxu0 0.0
    %261 = vmatprep.subr.mxu0 0.0
    %262 = vmatpush1.msra.mxu0 0.0
    %263 = vmatprep.subr.mxu0 0.0
    %264 = vmatpush1.msra.mxu0 0.0
    %265 = vmatprep.subr.mxu0 0.0
    %266 = vmatpush1.msra.mxu0 0.0
    %267 = vmatprep.subr.mxu0 0.0
    %268 = vmatpush1.msra.mxu0 0.0
    %269 = vmatprep.subr.mxu0 0.0
    %270 = vmatpush1.msra.mxu0 0.0
    %271 = vmatprep.subr.mxu0 0.0
    %272 = vmatpush1.msra.mxu0 0.0
    %273 = vmatprep.subr.mxu0 0.0
    %274 = vmatpush1.msra.mxu0 0.0
    %275 = vmatprep.mubr.f32.mxu0 0.0
    %276 = vmatmul.mubr.f32.gmra.mrb[0].mxu0 %v200
    %v277 = vpop.f32.mrb[0].mxu0
    %v278 = vadd.f32 %v182, %v277
    %v279 = vpop.f32.mrb[0].mxu0
    %280 = vmatprep.mubr.f32.mxu0 0.0
    %281 = vmatmul.mubr.f32.gmra.mrb[0].mxu0 %v203
    %v282 = vpop.f32.mrb[0].mxu0
    %v283 = vadd.f32 %v187, %v282
    %v284 = vpop.f32.mrb[0].mxu0
    %285 = vmatprep.mubr.f32.mxu0 0.0
    %286 = vmatmul.mubr.f32.gmra.mrb[0].mxu0 %v206
    %v287 = vpop.f32.mrb[0].mxu0
    %v288 = vadd.f32 %v192, %v287
    %v289 = vpop.f32.mrb[0].mxu0
    %290 = vmatprep.mubr.f32.mxu0 0.0
    %291 = vmatmul.mubr.f32.gmra.mrb[0].mxu0 %v209
    %v292 = vpop.f32.mrb[0].mxu0
    %v293 = vadd.f32 %v197, %v292
    %v294 = vpop.f32.mrb[0].mxu0
    %295 = vdwg.mxu0
    %v296 = vtanh.pop %v278
    %v297 = vtanh.pop %v283
    %v298 = vtanh.pop %v288
    %v299 = vtanh.pop %v293
    %v300 = vld [vmem:[%s3] sm:$0xff]
    %v301 = vld [vmem:[%s3 + $0x8] sm:$0xff]
    %v302 = vld [vmem:[%s4] sm:$0xff]
    %v303 = vld [vmem:[%s4 + $0x8] sm:$0xff]
    %305 = vset.pattern.permute.xlu0 0
    %306 = vperm.xlu0 %305, %v302
    %v307 = vpop.permute.xlu0 %306
    %310 = vset.pattern.permute.xlu0 0
    %311 = vperm.xlu0 %310, %v303
    %v312 = vpop.permute.xlu0 %311
    %v315 = vsel %vm67, %v300, 0
    %v318 = vsel %vm67, %v301, 0
    %320 = vmatprep.subr.mxu0 0.0
    %321 = vmatpush1.msra.mxu0 %v296
    %322 = vmatprep.subr.mxu0 0.0
    %323 = vmatpush1.msra.mxu0 %v297
    %324 = vmatprep.subr.mxu0 0.0
    %325 = vmatpush1.msra.mxu0 %v298
    %326 = vmatprep.subr.mxu0 0.0
    %327 = vmatpush1.msra.mxu0 %v299
    %328 = vmatprep.subr.mxu0 0.0
    %329 = vmatpush1.msra.mxu0 0.0
    %330 = vmatprep.subr.mxu0 0.0
    %331 = vmatpush1.msra.mxu0 0.0
    %332 = vmatprep.subr.mxu0 0.0
    %333 = vmatpush1.msra.mxu0 0.0
    %334 = vmatprep.subr.mxu0 0.0
    %335 = vmatpush1.msra.mxu0 0.0
    %336 = vmatprep.subr.mxu0 0.0
    %337 = vmatpush1.msra.mxu0 0.0
    %338 = vmatprep.subr.mxu0 0.0
    %339 = vmatpush1.msra.mxu0 0.0
    %340 = vmatprep.subr.mxu0 0.0
    %341 = vmatpush1.msra.mxu0 0.0
    %342 = vmatprep.subr.mxu0 0.0
    %343 = vmatpush1.msra.mxu0 0.0
    %344 = vmatprep.subr.mxu0 0.0
    %345 = vmatpush1.msra.mxu0 0.0
    %346 = vmatprep.subr.mxu0 0.0
    %347 = vmatpush1.msra.mxu0 0.0
    %348 = vmatprep.subr.mxu0 0.0
    %349 = vmatpush1.msra.mxu0 0.0
    %350 = vmatprep.subr.mxu0 0.0
    %351 = vmatpush1.msra.mxu0 0.0
    %352 = vmatprep.subr.mxu0 0.0
    %353 = vmatpush1.msra.mxu0 0.0
    %354 = vmatprep.subr.mxu0 0.0
    %355 = vmatpush1.msra.mxu0 0.0
    %356 = vmatprep.subr.mxu0 0.0
    %357 = vmatpush1.msra.mxu0 0.0
    %358 = vmatprep.subr.mxu0 0.0
    %359 = vmatpush1.msra.mxu0 0.0
    %360 = vmatprep.subr.mxu0 0.0
    %361 = vmatpush1.msra.mxu0 0.0
    %362 = vmatprep.subr.mxu0 0.0
    %363 = vmatpush1.msra.mxu0 0.0
    %364 = vmatprep.subr.mxu0 0.0
    %365 = vmatpush1.msra.mxu0 0.0
    %366 = vmatprep.subr.mxu0 0.0
    %367 = vmatpush1.msra.mxu0 0.0
    %368 = vmatprep.subr.mxu0 0.0
    %369 = vmatpush1.msra.mxu0 0.0
    %370 = vmatprep.subr.mxu0 0.0
    %371 = vmatpush1.msra.mxu0 0.0
    %372 = vmatprep.subr.mxu0 0.0
    %373 = vmatpush1.msra.mxu0 0.0
    %374 = vmatprep.subr.mxu0 0.0
    %375 = vmatpush1.msra.mxu0 0.0
    %376 = vmatprep.subr.mxu0 0.0
    %377 = vmatpush1.msra.mxu0 0.0
    %378 = vmatprep.subr.mxu0 0.0
    %379 = vmatpush1.msra.mxu0 0.0
    %380 = vmatprep.subr.mxu0 0.0
    %381 = vmatpush1.msra.mxu0 0.0
    %382 = vmatprep.subr.mxu0 0.0
    %383 = vmatpush1.msra.mxu0 0.0
    %384 = vmatprep.mubr.f32.mxu0 0.0
    %385 = vmatmul.mubr.f32.gmra.mrb[0].mxu0 %v315
    %v386 = vpop.f32.mrb[0].mxu0
    %v387 = vadd.f32 %v307, %v386
    %v388 = vpop.f32.mrb[0].mxu0
    %389 = vmatprep.mubr.f32.mxu0 0.0
    %390 = vmatmul.mubr.f32.gmra.mrb[0].mxu0 %v318
    %v391 = vpop.f32.mrb[0].mxu0
    %v392 = vadd.f32 %v312, %v391
    %v393 = vpop.f32.mrb[0].mxu0
    %394 = vdwg.mxu0
    %v395 = vld [vmem:[#allocation2 + $0x20] sm:$0xff]
    %v396 = vld [vmem:[#allocation2 + $0x28] sm:$0xff]
    %v397 = vld [vmem:[#allocation2 + $0x30] sm:$0xff]
    %v398 = vtanh.pop %v387
    %vm399 = vcmp.gt.f32.partialorder %v398, 0.0
    %v400 = vsel %vm399, %v395, %v396
    %v401 = vmul.f32 %v398, %v400
    %v402 = vadd.f32 %v397, %v401
    %403 = vst [vmem:[#allocation5] sm:$0xff] %v402
    %404 = vst [vmem:[#allocation5 + $0x8] sm:$0xff] %v392
    // Predicated region
    $region26: #{tpu_custom_call.1} parent=1 // pred_check
      _
    $region27: #{tpu_custom_call.1} parent=1 // pred_check_branch
      %406 = sbr.rel (0) target = $region29
    $region28: #{tpu_custom_call.1} parent=1 // pred_region
      %s408 = ssub.s32 256, 256
      %409 = vsyncadd [#allocation4], %s408
      %s410 = sshll.u32 [#allocation5], 4
      %s411 = int_to_ptr.vmem [resolvable:$true] %s410
      %416 = dma.vmem_to_hbm [thread:$0]  %s411, 256, %s5, [#allocation4], 128, 128, 8
    $region29: #{tpu_custom_call.1} parent=1 // pred_fallthru
      _
    // Predicated region
    $region30: #{tpu_custom_call.1} parent=1 // pred_check
      _
    $region31: #{tpu_custom_call.1} parent=1 // pred_check_branch
      %418 = sbr.rel (0) target = $region33
    $region32: #{tpu_custom_call.1} parent=1 // pred_region
      %419 = dma.done [#allocation4], 256
    $region33: #{tpu_custom_call.1} parent=1 // pred_fallthru
      _
    %420 = vsyncpa [#allocation3], 1
    %421 = vsyncpa [#allocation4], 1

</llo_original>
